<compile_context>
chip_gen: v7x
topology: tpu7x:2x2x1
jax: 0.10.0
libtpu: 0.0.40
codegen_flags: <defaults>
</compile_context>

<pallas_src>
import jax
import jax.numpy as jnp
from jax.experimental import pallas as pl
from jax.experimental.pallas import tpu as pltpu

BN_EPS = 1e-5

# Per-block byte budget (one input block); with input+output double-buffered
# this keeps peak VMEM well under the scoped limit on every generation.
DEFAULT_BLOCK_BYTES = 2 * 1024 * 1024
VMEM_LIMIT_BYTES = 32 * 1024 * 1024  # <= physical VMEM on v5e/v6e/v7x


# ----------------------------------------------------------------------------
# Kernels
# ----------------------------------------------------------------------------
def _bn_relu_onepass_kernel(x_ref, g_ref, b_ref, o_ref):
    """One-pass BN(train stats)+ReLU for a full (N, tc, HW) channel slab."""
    x = x_ref[...]                                            # (N, tc, HW) f32
    inv_cnt = 1.0 / (x.shape[0] * x.shape[2])
    # Per-channel sum and sum of squares (reduce batch axis, then lane axis).
    s = jnp.sum(jnp.sum(x, axis=0, keepdims=True), axis=2, keepdims=True)
    ss = jnp.sum(jnp.sum(x * x, axis=0, keepdims=True), axis=2, keepdims=True)
    mean = s * inv_cnt                                        # (1, tc, 1)
    var = ss * inv_cnt - mean * mean                          # biased variance
    inv_std = jax.lax.rsqrt(var + BN_EPS)
    scale = g_ref[...] * inv_std                              # (1, tc, 1)
    shift = b_ref[...] - mean * scale
    o_ref[...] = jnp.maximum(x * scale + shift, 0.0)


def _bn_stats_kernel(x_ref, sum_ref, ssq_ref):
    """Phase 1 of the streaming path: accumulate per-channel sum / sum-sq."""
    @pl.when(pl.program_id(1) == 0)
    def _():
        sum_ref[...] = jnp.zeros_like(sum_ref)
        ssq_ref[...] = jnp.zeros_like(ssq_ref)

    x = x_ref[...]                                            # (N, tc, t_hw)
    sum_ref[...] += jnp.sum(jnp.sum(x, axis=0, keepdims=True),
                            axis=2, keepdims=True)
    ssq_ref[...] += jnp.sum(jnp.sum(x * x, axis=0, keepdims=True),
                            axis=2, keepdims=True)


def _bn_apply_kernel(x_ref, scale_ref, shift_ref, o_ref):
    """Phase 2 of the streaming path: y = max(x*scale + shift, 0)."""
    o_ref[...] = jnp.maximum(
        x_ref[...] * scale_ref[...] + shift_ref[...], 0.0)


# ----------------------------------------------------------------------------
# Tile selection helpers
# ----------------------------------------------------------------------------
def _largest_channel_tile(C, bytes_per_channel, max_block_bytes):
    """Largest tc (multiple of 8 dividing C, or C itself) whose (N,tc,HW) block fits."""
    if C % 8 != 0:
        return C if C * bytes_per_channel <= max_block_bytes else None
    best = None
    for tc in range(8, C + 1, 8):
        if C % tc == 0 and tc * bytes_per_channel <= max_block_bytes:
            best = tc
    return best


def _pick_hw_tile(HW, N, tc, itemsize, max_block_bytes):
    """Largest t_hw (multiple of 128 dividing HW) fitting the budget.

    Falls back to the full extent (always a legal BlockSpec block dim).
    """
    upper = max(max_block_bytes // (N * tc * itemsize), 1)
    best = None
    for t in range(128, min(HW, upper) + 1, 128):
        if HW % t == 0:
            best = t
    # TODO(synk): pad H*W to a multiple of 128 for fully general shapes; here
    # we fall back to the full extent (correct, possibly lane-masked at edges).
    return best if best is not None else HW


# ----------------------------------------------------------------------------
# pallas_call wrappers
# ----------------------------------------------------------------------------
def _bn_relu_resident(x3, g3, b3, tc):
    N, C, HW = x3.shape
    return pl.pallas_call(
        _bn_relu_onepass_kernel,
        out_shape=jax.ShapeDtypeStruct((N, C, HW), x3.dtype),
        grid=(C // tc,),
        in_specs=[
            pl.BlockSpec((N, tc, HW), lambda c: (0, c, 0)),
            pl.BlockSpec((1, tc, 1), lambda c: (0, c, 0)),
            pl.BlockSpec((1, tc, 1), lambda c: (0, c, 0)),
        ],
        out_specs=pl.BlockSpec((N, tc, HW), lambda c: (0, c, 0)),
        compiler_params=pltpu.CompilerParams(
            dimension_semantics=("parallel",),
            vmem_limit_bytes=VMEM_LIMIT_BYTES,
        ),
    )(x3, g3, b3)


def _bn_relu_streaming(x3, g3, b3, tc, t_hw):
    N, C, HW = x3.shape
    grid = (C // tc, HW // t_hw)

    # Phase 1: per-channel sum / sum-of-squares (resident accumulator outputs).
    ssum, ssq = pl.pallas_call(
        _bn_stats_kernel,
        out_shape=(
            jax.ShapeDtypeStruct((1, C, 1), jnp.float32),
            jax.ShapeDtypeStruct((1, C, 1), jnp.float32),
        ),
        grid=grid,
        in_specs=[pl.BlockSpec((N, tc, t_hw), lambda c, h: (0, c, h))],
        out_specs=(
            pl.BlockSpec((1, tc, 1), lambda c, h: (0, c, 0)),
            pl.BlockSpec((1, tc, 1), lambda c, h: (0, c, 0)),
        ),
        compiler_params=pltpu.CompilerParams(
            dimension_semantics=("parallel", "arbitrary"),
            vmem_limit_bytes=VMEM_LIMIT_BYTES,
        ),
    )(x3)

    # Tiny per-channel glue (C elements): derive scale / shift once.
    inv_cnt = 1.0 / (N * HW)
    mean = ssum * inv_cnt
    var = ssq * inv_cnt - mean * mean
    inv_std = jax.lax.rsqrt(var + BN_EPS)
    scale = g3 * inv_std                                      # (1, C, 1)
    shift = b3 - mean * scale

    # Phase 2: stream tiles again, apply affine + ReLU.
    return pl.pallas_call(
        _bn_apply_kernel,
        out_shape=jax.ShapeDtypeStruct((N, C, HW), x3.dtype),
        grid=grid,
        in_specs=[
            pl.BlockSpec((N, tc, t_hw), lambda c, h: (0, c, h)),
            pl.BlockSpec((1, tc, 1), lambda c, h: (0, c, 0)),
            pl.BlockSpec((1, tc, 1), lambda c, h: (0, c, 0)),
        ],
        out_specs=pl.BlockSpec((N, tc, t_hw), lambda c, h: (0, c, h)),
        compiler_params=pltpu.CompilerParams(
            dimension_semantics=("parallel", "parallel"),
            vmem_limit_bytes=VMEM_LIMIT_BYTES,
        ),
    )(x3, scale, shift)


def basic_layer_forward(x_nchw, gamma, beta, *,
                        max_block_bytes=DEFAULT_BLOCK_BYTES):
    """Forward of BasicLayer (weight=identity, BN train-stats, ReLU).

    x_nchw: (N, C, H, W) float32; gamma, beta: (C,) float32.
    Returns (N, C, H, W) float32.
    """
    N, C, H, W = x_nchw.shape
    HW = H * W
    x3 = x_nchw.reshape(N, C, HW)          # free contiguous reshape (no transpose)
    g3 = gamma.reshape(1, C, 1)
    b3 = beta.reshape(1, C, 1)

    bytes_per_channel = N * HW * x3.dtype.itemsize
    tc_res = _largest_channel_tile(C, bytes_per_channel, max_block_bytes)
    if tc_res is not None:
        out3 = _bn_relu_resident(x3, g3, b3, tc_res)
    else:
        tc = 8 if C % 8 == 0 else C
        t_hw = _pick_hw_tile(HW, N, tc, x3.dtype.itemsize, max_block_bytes)
        out3 = _bn_relu_streaming(x3, g3, b3, tc, t_hw)
    return out3.reshape(N, C, H, W)


# ----------------------------------------------------------------------------
# Pure-JAX reference (mirrors PyTorch training-mode BN + ReLU)
# ----------------------------------------------------------------------------
def reference_forward(x_nchw, gamma, beta):
    mean = jnp.mean(x_nchw, axis=(0, 2, 3), keepdims=True)
    var = jnp.mean((x_nchw - mean) ** 2, axis=(0, 2, 3), keepdims=True)
    g = gamma.reshape(1, -1, 1, 1)
    b = beta.reshape(1, -1, 1, 1)
    y = (x_nchw - mean) * jax.lax.rsqrt(var + BN_EPS) * g + b
    return jnp.maximum(y, 0.0)


if __name__ == "__main__":
    key = jax.random.PRNGKey(0)
    kx, kg, kb = jax.random.split(key, 3)

    # Small shapes: batch=2, channels=16 (= in_channels = out_channels), 16x16.
    N, C, H, W = 2, 16, 16, 16
    x = jax.random.normal(kx, (N, C, H, W), dtype=jnp.float32)
    # Deterministic synthetic BatchNorm affine parameters (not a checkpoint).
    gamma = 1.0 + 0.1 * jax.random.normal(kg, (C,), dtype=jnp.float32)
    beta = 0.1 * jax.random.normal(kb, (C,), dtype=jnp.float32)

    ref = reference_forward(x, gamma, beta)

    # Default budget -> single-pass channel-resident path.
    out = jax.block_until_ready(basic_layer_forward(x, gamma, beta))
    assert out.shape == (N, C, H, W)
    assert jnp.allclose(out, ref, atol=1e-4, rtol=1e-4), "resident path mismatch"

    # Small budget -> exercises the tiled, two-pass streaming path
    # (grid=(2,2): channel blocks of 8, spatial tiles of 128 lanes).
    out_stream = jax.block_until_ready(
        basic_layer_forward(x, gamma, beta, max_block_bytes=8 * 1024))
    assert jnp.allclose(out_stream, ref, atol=1e-4, rtol=1e-4), \
        "streaming path mismatch"

    print("KERNEL_OK")
</pallas_src>

<mosaic_0001>
module attributes {stable_mosaic.version = 11 : i64} {
  func.func @_bn_relu_onepass_kernel(%arg0: i32, %arg1: memref<2x16x256xf32, #tpu.memory_space<vmem>>, %arg2: memref<1x16x1xf32, #tpu.memory_space<vmem>>, %arg3: memref<1x16x1xf32, #tpu.memory_space<vmem>>, %arg4: memref<2x16x256xf32, #tpu.memory_space<vmem>>) attributes {dimension_semantics = [#tpu.dimension_semantics<parallel>], iteration_bounds = array<i64: 1>, scalar_prefetch = 0 : i64, scratch_operands = 0 : i64, tpu.core_type = #tpu.core_type<tc>, window_params = [{transform_indices = @transform_0, window_bounds = array<i64: 2, 16, 256>}, {transform_indices = @transform_1, window_bounds = array<i64: 1, 16, 1>}, {transform_indices = @transform_2, window_bounds = array<i64: 1, 16, 1>}, {transform_indices = @transform_3, window_bounds = array<i64: 2, 16, 256>}]} {
    %c0 = arith.constant 0 : index
    %c0_0 = arith.constant 0 : index
    %c0_1 = arith.constant 0 : index
    %0 = vector.load %arg1[%c0, %c0_0, %c0_1] : memref<2x16x256xf32, #tpu.memory_space<vmem>>, vector<2x16x256xf32>
    %cst = arith.constant dense<0.000000e+00> : vector<16x256xf32>
    %1 = vector.multi_reduction <add>, %0, %cst [0] : vector<2x16x256xf32> to vector<16x256xf32>
    %2 = vector.shape_cast %1 : vector<16x256xf32> to vector<1x16x256xf32>
    %cst_2 = arith.constant dense<0.000000e+00> : vector<1x16xf32>
    %3 = vector.multi_reduction <add>, %2, %cst_2 [2] : vector<1x16x256xf32> to vector<1x16xf32>
    %4 = vector.shape_cast %3 : vector<1x16xf32> to vector<1x16x1xf32>
    %5 = arith.mulf %0, %0 : vector<2x16x256xf32>
    %cst_3 = arith.constant dense<0.000000e+00> : vector<16x256xf32>
    %6 = vector.multi_reduction <add>, %5, %cst_3 [0] : vector<2x16x256xf32> to vector<16x256xf32>
    %7 = vector.shape_cast %6 : vector<16x256xf32> to vector<1x16x256xf32>
    %cst_4 = arith.constant dense<0.000000e+00> : vector<1x16xf32>
    %8 = vector.multi_reduction <add>, %7, %cst_4 [2] : vector<1x16x256xf32> to vector<1x16xf32>
    %9 = vector.shape_cast %8 : vector<1x16xf32> to vector<1x16x1xf32>
    %cst_5 = arith.constant 0.001953125 : f32
    %10 = vector.broadcast %cst_5 : f32 to vector<1x16x1xf32>
    %11 = arith.mulf %4, %10 : vector<1x16x1xf32>
    %cst_6 = arith.constant 0.001953125 : f32
    %12 = vector.broadcast %cst_6 : f32 to vector<1x16x1xf32>
    %13 = arith.mulf %9, %12 : vector<1x16x1xf32>
    %14 = arith.mulf %11, %11 : vector<1x16x1xf32>
    %15 = arith.subf %13, %14 : vector<1x16x1xf32>
    %cst_7 = arith.constant 9.99999974E-6 : f32
    %16 = vector.broadcast %cst_7 : f32 to vector<1x16x1xf32>
    %17 = arith.addf %15, %16 : vector<1x16x1xf32>
    %18 = math.rsqrt %17 : vector<1x16x1xf32>
    %c0_8 = arith.constant 0 : index
    %c0_9 = arith.constant 0 : index
    %c0_10 = arith.constant 0 : index
    %19 = vector.load %arg2[%c0_8, %c0_9, %c0_10] : memref<1x16x1xf32, #tpu.memory_space<vmem>>, vector<1x16x1xf32>
    %20 = arith.mulf %19, %18 : vector<1x16x1xf32>
    %c0_11 = arith.constant 0 : index
    %c0_12 = arith.constant 0 : index
    %c0_13 = arith.constant 0 : index
    %21 = vector.load %arg3[%c0_11, %c0_12, %c0_13] : memref<1x16x1xf32, #tpu.memory_space<vmem>>, vector<1x16x1xf32>
    %22 = arith.mulf %11, %20 : vector<1x16x1xf32>
    %23 = arith.subf %21, %22 : vector<1x16x1xf32>
    %24 = vector.broadcast %20 : vector<1x16x1xf32> to vector<2x16x256xf32>
    %25 = arith.mulf %0, %24 : vector<2x16x256xf32>
    %26 = vector.broadcast %23 : vector<1x16x1xf32> to vector<2x16x256xf32>
    %27 = arith.addf %25, %26 : vector<2x16x256xf32>
    %cst_14 = arith.constant 0.000000e+00 : f32
    %28 = vector.broadcast %cst_14 : f32 to vector<2x16x256xf32>
    %29 = arith.maximumf %27, %28 : vector<2x16x256xf32>
    %c0_15 = arith.constant 0 : index
    %c0_16 = arith.constant 0 : index
    %c0_17 = arith.constant 0 : index
    %30 = vector.load %arg4[%c0_15, %c0_16, %c0_17] : memref<2x16x256xf32, #tpu.memory_space<vmem>>, vector<2x16x256xf32>
    tpu.vector_store %arg4[%c0_15, %c0_16, %c0_17], %29 {strides = array<i32>} : memref<2x16x256xf32, #tpu.memory_space<vmem>>, vector<2x16x256xf32>,
    return
  }
  func.func @transform_0(%arg0: i32) -> (i32, i32, i32) {
    %c0_i32 = arith.constant 0 : i32
    %c0_i32_0 = arith.constant 0 : i32
    %c0_i32_1 = arith.constant 0 : i32
    return %c0_i32, %arg0, %c0_i32_0 : i32, i32, i32
  }
  func.func @transform_1(%arg0: i32) -> (i32, i32, i32) {
    %c0_i32 = arith.constant 0 : i32
    %c0_i32_0 = arith.constant 0 : i32
    %c0_i32_1 = arith.constant 0 : i32
    return %c0_i32, %arg0, %c0_i32_0 : i32, i32, i32
  }
  func.func @transform_2(%arg0: i32) -> (i32, i32, i32) {
    %c0_i32 = arith.constant 0 : i32
    %c0_i32_0 = arith.constant 0 : i32
    %c0_i32_1 = arith.constant 0 : i32
    return %c0_i32, %arg0, %c0_i32_0 : i32, i32, i32
  }
  func.func @transform_3(%arg0: i32) -> (i32, i32, i32) {
    %c0_i32 = arith.constant 0 : i32
    %c0_i32_0 = arith.constant 0 : i32
    %c0_i32_1 = arith.constant 0 : i32
    return %c0_i32, %arg0, %c0_i32_0 : i32, i32, i32
  }
}

</mosaic_0001>

<llo_original>
// kernel: tpu_custom_call.1
$region0: #{tpu_custom_call.1}
  #allocation0 [shape = 'u32[]', space=smem, size = 0x4, offset = 0x4, fixed_abs, tag = 'smem constant byte address 0x4 - core index']
  #allocation1 [shape = 'u32[144,128]{1,0:T(1,128)}', space=vmem, size = 0x12000, scoped, tag = 'internal scratch']
  %s0 = inlined_call_operand.hbm [shape: f32[2,16,256], index: 0, kind: input, shape index: {}]
  %s1 = inlined_call_operand.vmem [shape: f32[1,16,1], index: 1, kind: input, shape index: {}]
  %s2 = inlined_call_operand.vmem [shape: f32[1,16,1], index: 2, kind: input, shape index: {}]
  %s3 = inlined_call_operand.hbm [shape: f32[2,16,256], index: 3, kind: output, shape index: {}]
  %s4 = sld [smem:[#allocation0]]
  $region26: #{tpu_custom_call.1} parent=0
    _
  %s6 = ssub.s32 1, %s4
  %s7 = scalar_select 0, %s6, %s4
  $region1: #{tpu_custom_call.1} parent=0
    #allocation2 [shape = 'u8[32768]{0}', space=vmem, size = 0x8000, scoped, tag = 'input window, operand 0, single buffered']
    #allocation3 [shape = 's32[1]{0}', space=sflag, size = 0x4, scoped, tag = 'scoped memory for tpu_custom_call.1']
    #allocation4 [shape = 's32[1]{0}', space=sflag, size = 0x4, scoped, tag = 'scoped memory for tpu_custom_call.1']
    #allocation5 [shape = 'u8[32768]{0}', space=vmem, size = 0x8000, scoped, tag = 'output window, operand 0, single buffered']
    %8 = vsyncpa [#allocation3], 0
    %9 = vsyncpa [#allocation4], 0
    // Predicated region
    $region2: #{tpu_custom_call.1} parent=1 // pred_check
      _
    $region3: #{tpu_custom_call.1} parent=1 // pred_check_branch
      %11 = sbr.rel (0) target = $region5
    $region4: #{tpu_custom_call.1} parent=1 // pred_region
      %s13 = ssub.s32 1024, 1024
      %14 = vsyncadd [#allocation3], %s13
      %s15 = sshll.u32 [#allocation2], 4
      %s16 = int_to_ptr.vmem [resolvable:$true] %s15
      %21 = dma.hbm_to_vmem [thread:$0]  %s0, 1024, %s16, [#allocation3], 256, 256, 16
    $region5: #{tpu_custom_call.1} parent=1 // pred_fallthru
      _
    // Predicated region
    $region6: #{tpu_custom_call.1} parent=1 // pred_check
      _
    $region7: #{tpu_custom_call.1} parent=1 // pred_check_branch
      %23 = sbr.rel (0) target = $region9
    $region8: #{tpu_custom_call.1} parent=1 // pred_region
      _
    $region9: #{tpu_custom_call.1} parent=1 // pred_fallthru
      _
    // Predicated region
    $region10: #{tpu_custom_call.1} parent=1 // pred_check
      _
    $region11: #{tpu_custom_call.1} parent=1 // pred_check_branch
      %25 = sbr.rel (0) target = $region13
    $region12: #{tpu_custom_call.1} parent=1 // pred_region
      _
    $region13: #{tpu_custom_call.1} parent=1 // pred_fallthru
      _
    // Predicated region
    $region14: #{tpu_custom_call.1} parent=1 // pred_check
      _
    $region15: #{tpu_custom_call.1} parent=1 // pred_check_branch
      %27 = sbr.rel (0) target = $region17
    $region16: #{tpu_custom_call.1} parent=1 // pred_region
      %28 = dma.done [#allocation3], 1024
    $region17: #{tpu_custom_call.1} parent=1 // pred_fallthru
      _
    %v29 = vld [vmem:[#allocation2] sm:$0xff]
    %v30 = vld [vmem:[#allocation2 + $0x8] sm:$0xff]
    %v31 = vld [vmem:[#allocation2 + $0x10] sm:$0xff]
    %v32 = vld [vmem:[#allocation2 + $0x18] sm:$0xff]
    %v33 = vld [vmem:[#allocation2 + $0x20] sm:$0xff]
    %v34 = vld [vmem:[#allocation2 + $0x28] sm:$0xff]
    %v35 = vld [vmem:[#allocation2 + $0x30] sm:$0xff]
    %v36 = vld [vmem:[#allocation2 + $0x38] sm:$0xff]
    %v37 = vadd.f32 %v29, %v33
    %v38 = vadd.f32 %v30, %v34
    %v39 = vadd.f32 %v31, %v35
    %v40 = vadd.f32 %v32, %v36
    %v41 = vadd.f32 %v37, %v38
    %42 = vadd.xlane.f32.xlu0 %v41
    %v43 = vpop.xlane.xlu0 %42
    %v44 = vadd.f32 %v39, %v40
    %45 = vadd.xlane.f32.xlu0 %v44
    %v46 = vpop.xlane.xlu0 %45
    %v47 = vmul.f32 %v29, %v29
    %v48 = vmul.f32 %v30, %v30
    %v49 = vmul.f32 %v31, %v31
    %v50 = vmul.f32 %v32, %v32
    %v51 = vmul.f32 %v33, %v33
    %v52 = vmul.f32 %v34, %v34
    %v53 = vmul.f32 %v35, %v35
    %v54 = vmul.f32 %v36, %v36
    %v55 = vadd.f32 %v47, %v51
    %v56 = vadd.f32 %v48, %v52
    %v57 = vadd.f32 %v49, %v53
    %v58 = vadd.f32 %v50, %v54
    %v59 = vadd.f32 %v55, %v56
    %60 = vadd.xlane.f32.xlu0 %v59
    %v61 = vpop.xlane.xlu0 %60
    %v62 = vadd.f32 %v57, %v58
    %63 = vadd.xlane.f32.xlu0 %v62
    %v64 = vpop.xlane.xlu0 %63
    %v65 = vmul.f32 %v43, 0.001953125
    %v66 = vmul.f32 %v46, 0.001953125
    %v67 = vmul.f32 %v61, 0.001953125
    %v68 = vmul.f32 %v64, 0.001953125
    %v69 = vmul.f32 %v65, %v65
    %v70 = vmul.f32 %v66, %v66
    %v71 = vsub.f32 %v67, %v69
    %v72 = vsub.f32 %v68, %v70
    %v73 = vadd.f32 %v71, 1e-05
    %v74 = vadd.f32 %v72, 1e-05
    %v75 = vrsqrt.pop %v73
    %v76 = vrsqrt.pop %v74
    %v77 = vld [vmem:[%s1] sm:$0xff]
    %v78 = vld [vmem:[%s1 + $0x8] sm:$0xff]
    %v79 = vmul.f32 %v77, %v75
    %v80 = vmul.f32 %v78, %v76
    %v81 = vld [vmem:[%s2] sm:$0xff]
    %v82 = vld [vmem:[%s2 + $0x8] sm:$0xff]
    %v83 = vmul.f32 %v65, %v79
    %v84 = vmul.f32 %v66, %v80
    %v85 = vsub.f32 %v81, %v83
    %v86 = vsub.f32 %v82, %v84
    %88 = vset.pattern.permute.xlu0 0
    %89 = vperm.xlu0 %88, %v79
    %v90 = vpop.permute.xlu0 %89
    %93 = vset.pattern.permute.xlu0 0
    %94 = vperm.xlu0 %93, %v80
    %v95 = vpop.permute.xlu0 %94
    %v97 = vmul.f32 %v29, %v90
    %v98 = vmul.f32 %v30, %v90
    %v99 = vmul.f32 %v31, %v95
    %v100 = vmul.f32 %v32, %v95
    %v101 = vmul.f32 %v33, %v90
    %v102 = vmul.f32 %v34, %v90
    %v103 = vmul.f32 %v35, %v95
    %v104 = vmul.f32 %v36, %v95
    %106 = vset.pattern.permute.xlu0 0
    %107 = vperm.xlu0 %106, %v85
    %v108 = vpop.permute.xlu0 %107
    %111 = vset.pattern.permute.xlu0 0
    %112 = vperm.xlu0 %111, %v86
    %v113 = vpop.permute.xlu0 %112
    %v115 = vadd.f32 %v97, %v108
    %v116 = vadd.f32 %v98, %v108
    %v117 = vadd.f32 %v99, %v113
    %v118 = vadd.f32 %v100, %v113
    %v119 = vadd.f32 %v101, %v108
    %v120 = vadd.f32 %v102, %v108
    %v121 = vadd.f32 %v103, %v113
    %v122 = vadd.f32 %v104, %v113
    %v123 = vmax.f32 %v115, 0.0
    %v124 = vmax.f32 %v116, 0.0
    %v125 = vmax.f32 %v117, 0.0
    %v126 = vmax.f32 %v118, 0.0
    %v127 = vmax.f32 %v119, 0.0
    %v128 = vmax.f32 %v120, 0.0
    %v129 = vmax.f32 %v121, 0.0
    %v130 = vmax.f32 %v122, 0.0
    %131 = vst [vmem:[#allocation5] sm:$0xff] %v123
    %132 = vst [vmem:[#allocation5 + $0x8] sm:$0xff] %v124
    %133 = vst [vmem:[#allocation5 + $0x10] sm:$0xff] %v125
    %134 = vst [vmem:[#allocation5 + $0x18] sm:$0xff] %v126
    %135 = vst [vmem:[#allocation5 + $0x20] sm:$0xff] %v127
    %136 = vst [vmem:[#allocation5 + $0x28] sm:$0xff] %v128
    %137 = vst [vmem:[#allocation5 + $0x30] sm:$0xff] %v129
    %138 = vst [vmem:[#allocation5 + $0x38] sm:$0xff] %v130
    // Predicated region
    $region18: #{tpu_custom_call.1} parent=1 // pred_check
      _
    $region19: #{tpu_custom_call.1} parent=1 // pred_check_branch
      %140 = sbr.rel (0) target = $region21
    $region20: #{tpu_custom_call.1} parent=1 // pred_region
      %s142 = ssub.s32 1024, 1024
      %143 = vsyncadd [#allocation4], %s142
      %s144 = sshll.u32 [#allocation5], 4
      %s145 = int_to_ptr.vmem [resolvable:$true] %s144
      %150 = dma.vmem_to_hbm [thread:$0]  %s145, 1024, %s3, [#allocation4], 256, 256, 16
    $region21: #{tpu_custom_call.1} parent=1 // pred_fallthru
      _
    // Predicated region
    $region22: #{tpu_custom_call.1} parent=1 // pred_check
      _
    $region23: #{tpu_custom_call.1} parent=1 // pred_check_branch
      %152 = sbr.rel (0) target = $region25
    $region24: #{tpu_custom_call.1} parent=1 // pred_region
      %153 = dma.done [#allocation4], 1024
    $region25: #{tpu_custom_call.1} parent=1 // pred_fallthru
      _
    %154 = vsyncpa [#allocation3], 1
    %155 = vsyncpa [#allocation4], 1

</llo_original>
